<compile_context>
chip_gen: v6e
topology: v6e:2x2x1
jax: 0.10.0
libtpu: 0.0.40
codegen_flags: <defaults>
</compile_context>

<pallas_src>
import functools

import numpy as np
import jax
import jax.numpy as jnp
from jax.experimental import pallas as pl
from jax.experimental.pallas import tpu as pltpu


def _round_up(x, m):
    return ((x + m - 1) // m) * m


def _classifier_kernel(x_ref, w1_ref, w2_ref, w3_ref, bias_ref, o_ref, *, hp, cp):
    # Packed biases: row 0 = b1, row 1 = b2, row 2 = b3 (f32, zero-padded).
    b1 = bias_ref[0:1, 0:hp]
    b2 = bias_ref[1:2, 0:hp]
    b3 = bias_ref[2:3, 0:cp]

    # x may arrive as f32 (aligned fast path) or pre-padded bf16; the cast is
    # a no-op in the latter case and a cheap VPU op (hidden under the MXU) in
    # the former.
    x = x_ref[...].astype(jnp.bfloat16)

    # ad_layer1 + relu1  (bf16 MXU operands, f32 accumulation, f32 elementwise)
    h = jnp.dot(x, w1_ref[...], preferred_element_type=jnp.float32)
    h = jnp.maximum(h + b1, 0.0)
    # ad_layer2 + relu2
    h = jnp.dot(h.astype(jnp.bfloat16), w2_ref[...],
                preferred_element_type=jnp.float32)
    h = jnp.maximum(h + b2, 0.0)
    # ad_layer3 (logits, no activation) -- lane-dense (cp-wide) unmasked store.
    y = jnp.dot(h.astype(jnp.bfloat16), w3_ref[...],
                preferred_element_type=jnp.float32)
    o_ref[...] = (y + b3).astype(o_ref.dtype)


def prepare_params(params):
    """One-time weight preparation (hoisted out of the per-call forward).

    Pads every feature dim to a multiple of 128 (lane axis), casts MXU
    operands to bf16 and coalesces the three biases into a single
    (8, 128)-aligned f32 block (one DMA). Cache the result and reuse it for
    every forward call.
    """
    w1, b1 = params["w1"], params["b1"]
    w2, b2 = params["w2"], params["b2"]
    w3, b3 = params["w3"], params["b3"]

    F, H = w1.shape
    C = w3.shape[1]
    Fp, Hp, Cp = _round_up(F, 128), _round_up(H, 128), _round_up(C, 128)
    BW = max(Hp, Cp)

    bf = jnp.bfloat16
    w1_p = jnp.zeros((Fp, Hp), bf).at[:F, :H].set(w1.astype(bf))
    w2_p = jnp.zeros((Hp, Hp), bf).at[:H, :H].set(w2.astype(bf))
    w3_p = jnp.zeros((Hp, Cp), bf).at[:H, :C].set(w3.astype(bf))
    bias_p = (jnp.zeros((8, BW), jnp.float32)
              .at[0, :H].set(b1.reshape(-1).astype(jnp.float32))
              .at[1, :H].set(b2.reshape(-1).astype(jnp.float32))
              .at[2, :C].set(b3.reshape(-1).astype(jnp.float32)))

    return {"w1_p": w1_p, "w2_p": w2_p, "w3_p": w3_p, "bias_p": bias_p,
            "dims": (F, H, C), "padded": (Fp, Hp, Cp, BW)}


def classifier_network(x, prepared, *, block_b=None, out_dtype=None,
                       vmem_limit_bytes=None):
    """Forward pass. x: [B, out_features] float32; prepared: prepare_params()."""
    F, H, C = prepared["dims"]
    Fp, Hp, Cp, BW = prepared["padded"]
    B, Fx = x.shape
    assert Fx == F, f"expected {F} input features, got {Fx}"
    if out_dtype is None:
        out_dtype = jnp.float32          # parity with the PyTorch module
    out_itemsize = np.dtype(out_dtype).itemsize

    # Batch tile: multiple of 8 (sublane), cap at 512 (amortizes per-step
    # overhead; ~85% of HBM roofline per tile sweeps). No forced multi-step
    # split -- that was pure overhead on single-TC v5e/v6e.
    if block_b is None:
        block_b = min(512, _round_up(B, 8))
    assert block_b % 8 == 0, "block_b must be a multiple of 8"
    Bp = _round_up(B, block_b)
    n_steps = Bp // block_b

    # Aligned fast path: feed f32 x directly, cast to bf16 inside the kernel.
    # Only materialize a padded (bf16) copy when padding is actually needed.
    if Bp == B and Fp == F:
        x_in = x
    else:
        x_in = jnp.zeros((Bp, Fp), jnp.bfloat16).at[:B, :F].set(
            x.astype(jnp.bfloat16))

    weight_bytes = 2 * (Fp * Hp + Hp * Hp + Hp * Cp)              # bf16 weights
    act_bytes = Bp * (Fp * x_in.dtype.itemsize + Cp * out_itemsize)
    # Shard the batch axis across TensorCores (v7x megacore) only when
    # activation traffic dominates; otherwise each core would re-pull the
    # full (dominant) weight tensors from HBM.
    parallel = (n_steps > 1) and (act_bytes >= 2 * weight_bytes)
    dim_sem = ("parallel",) if parallel else ("arbitrary",)

    if vmem_limit_bytes is None:
        need = (2 * block_b * Fp * x_in.dtype.itemsize   # x tile (double-buffered)
                + 2 * weight_bytes                        # resident weights (2 bufs)
                + 2 * 8 * BW * 4                          # packed biases
                + 2 * block_b * Cp * out_itemsize)        # out tile (double-buffered)
        vmem_limit_bytes = max(int(need * 1.25) + (2 << 20), 16 << 20)

    kernel = functools.partial(_classifier_kernel, hp=Hp, cp=Cp)

    y_p = pl.pallas_call(
        kernel,
        out_shape=jax.ShapeDtypeStruct((Bp, Cp), out_dtype),
        grid_spec=pltpu.PrefetchScalarGridSpec(
            num_scalar_prefetch=0,
            grid=(n_steps,),
            in_specs=[
                pl.BlockSpec((block_b, Fp), lambda i: (i, 0)),   # x tile (pipelined)
                pl.BlockSpec((Fp, Hp), lambda i: (0, 0)),        # W1 (resident)
                pl.BlockSpec((Hp, Hp), lambda i: (0, 0)),        # W2 (resident)
                pl.BlockSpec((Hp, Cp), lambda i: (0, 0)),        # W3 (resident)
                pl.BlockSpec((8, BW), lambda i: (0, 0)),         # packed biases
            ],
            out_specs=pl.BlockSpec((block_b, Cp), lambda i: (i, 0)),
        ),
        compiler_params=pltpu.CompilerParams(
            dimension_semantics=dim_sem,
            vmem_limit_bytes=vmem_limit_bytes),
    )(x_in, prepared["w1_p"], prepared["w2_p"], prepared["w3_p"],
      prepared["bias_p"])

    # Slice padded rows (batch) and padded lanes (classes) off outside the kernel.
    return y_p[:B, :C]


def init_params(key, out_features, source_classifier_width, n_class):
    """Xavier-normal weights, zero biases (matches init_weights)."""
    k1, k2, k3 = jax.random.split(key, 3)

    def xavier_normal(k, fan_in, fan_out):
        std = (2.0 / (fan_in + fan_out)) ** 0.5
        # stored as [in, out] so the kernel computes x @ W (== PyTorch x @ W.T)
        return std * jax.random.normal(k, (fan_in, fan_out), dtype=jnp.float32)

    H = source_classifier_width
    return {
        "w1": xavier_normal(k1, out_features, H),
        "b1": jnp.zeros((H,), jnp.float32),
        "w2": xavier_normal(k2, H, H),
        "b2": jnp.zeros((H,), jnp.float32),
        "w3": xavier_normal(k3, H, n_class),
        "b3": jnp.zeros((n_class,), jnp.float32),
    }


def reference_forward_f32(x, params):
    h = jnp.maximum(x @ params["w1"] + params["b1"], 0.0)
    h = jnp.maximum(h @ params["w2"] + params["b2"], 0.0)
    return h @ params["w3"] + params["b3"]


def reference_forward_bf16(x, params):
    # Mirrors the kernel's precision: bf16 MXU operands, f32 accumulation,
    # f32 bias-add / ReLU.
    bf = jnp.bfloat16
    h = jnp.dot(x.astype(bf), params["w1"].astype(bf),
                preferred_element_type=jnp.float32)
    h = jnp.maximum(h + params["b1"], 0.0)
    h = jnp.dot(h.astype(bf), params["w2"].astype(bf),
                preferred_element_type=jnp.float32)
    h = jnp.maximum(h + params["b2"], 0.0)
    y = jnp.dot(h.astype(bf), params["w3"].astype(bf),
                preferred_element_type=jnp.float32)
    return y + params["b3"]


if __name__ == "__main__":
    key = jax.random.PRNGKey(0)

    # --- Config 1: unaligned dims (F=32, H=64, C=8) -> padded bf16-x path ---
    batch, out_features, width, n_class = 8, 32, 64, 8
    kx, kp, key = jax.random.split(key, 3)
    x = jax.random.normal(kx, (batch, out_features), dtype=jnp.float32)
    params = init_params(kp, out_features, width, n_class)
    prepared = prepare_params(params)          # one-time weight pad + bf16 cast
    y = jax.block_until_ready(classifier_network(x, prepared))
    assert y.shape == (batch, n_class)
    assert jnp.allclose(y, reference_forward_bf16(x, params), atol=5e-3, rtol=5e-3)
    assert jnp.allclose(y, reference_forward_f32(x, params), atol=1e-1, rtol=1e-1)

    # --- Config 2: lane-aligned dims (F=128, H=128) -> f32 x fed directly,
    #     bf16 cast happens on the VPU inside the kernel (no wrapper copy) ---
    batch2, out_features2, width2, n_class2 = 16, 128, 128, 16
    kx2, kp2 = jax.random.split(key)
    x2 = jax.random.normal(kx2, (batch2, out_features2), dtype=jnp.float32)
    params2 = init_params(kp2, out_features2, width2, n_class2)
    prepared2 = prepare_params(params2)
    y2 = jax.block_until_ready(classifier_network(x2, prepared2))
    assert y2.shape == (batch2, n_class2)
    assert jnp.allclose(y2, reference_forward_bf16(x2, params2), atol=5e-3, rtol=5e-3)
    assert jnp.allclose(y2, reference_forward_f32(x2, params2), atol=1e-1, rtol=1e-1)

    print("KERNEL_OK")
</pallas_src>

<mosaic_0001>
module attributes {stable_mosaic.version = 11 : i64} {
  func.func @_classifier_kernel(%arg0: i32, %arg1: memref<8x128xbf16, #tpu.memory_space<vmem>>, %arg2: memref<128x128xbf16, #tpu.memory_space<vmem>>, %arg3: memref<128x128xbf16, #tpu.memory_space<vmem>>, %arg4: memref<128x128xbf16, #tpu.memory_space<vmem>>, %arg5: memref<8x128xf32, #tpu.memory_space<vmem>>, %arg6: memref<8x128xf32, #tpu.memory_space<vmem>>) attributes {dimension_semantics = [#tpu.dimension_semantics<arbitrary>], iteration_bounds = array<i64: 1>, scalar_prefetch = 0 : i64, scratch_operands = 0 : i64, tpu.core_type = #tpu.core_type<tc>, window_params = [{transform_indices = @transform_0, window_bounds = array<i64: 8, 128>}, {pipeline_mode = #tpu.pipeline_mode<synchronous>, transform_indices = @transform_1, window_bounds = array<i64: 128, 128>}, {pipeline_mode = #tpu.pipeline_mode<synchronous>, transform_indices = @transform_2, window_bounds = array<i64: 128, 128>}, {pipeline_mode = #tpu.pipeline_mode<synchronous>, transform_indices = @transform_3, window_bounds = array<i64: 128, 128>}, {pipeline_mode = #tpu.pipeline_mode<synchronous>, transform_indices = @transform_4, window_bounds = array<i64: 8, 128>}, {transform_indices = @transform_5, window_bounds = array<i64: 8, 128>}]} {
    %c0 = arith.constant 0 : index
    %c0_0 = arith.constant 0 : index
    %0 = vector.load %arg5[%c0, %c0_0] : memref<8x128xf32, #tpu.memory_space<vmem>>, vector<1x128xf32>
    %c1 = arith.constant 1 : index
    %c0_1 = arith.constant 0 : index
    %1 = vector.load %arg5[%c1, %c0_1] : memref<8x128xf32, #tpu.memory_space<vmem>>, vector<1x128xf32>
    %c2 = arith.constant 2 : index
    %c0_2 = arith.constant 0 : index
    %2 = vector.load %arg5[%c2, %c0_2] : memref<8x128xf32, #tpu.memory_space<vmem>>, vector<1x128xf32>
    %c0_3 = arith.constant 0 : index
    %c0_4 = arith.constant 0 : index
    %3 = vector.load %arg1[%c0_3, %c0_4] : memref<8x128xbf16, #tpu.memory_space<vmem>>, vector<8x128xbf16>
    %c0_5 = arith.constant 0 : index
    %c0_6 = arith.constant 0 : index
    %4 = vector.load %arg2[%c0_5, %c0_6] : memref<128x128xbf16, #tpu.memory_space<vmem>>, vector<128x128xbf16>
    %cst = arith.constant dense<0.000000e+00> : vector<8x128xf32>
    %5 = tpu.matmul %3, %4, %cst {dimension_numbers = #tpu.dot_dimension_numbers<[1], [0], [0], [1], [0, 0, 1, 1], [], []>} : vector<8x128xbf16>, vector<128x128xbf16>, vector<8x128xf32> -> vector<8x128xf32>
    %6 = vector.broadcast %0 : vector<1x128xf32> to vector<8x128xf32>
    %7 = arith.addf %5, %6 : vector<8x128xf32>
    %cst_7 = arith.constant 0.000000e+00 : f32
    %8 = vector.broadcast %cst_7 : f32 to vector<8x128xf32>
    %9 = arith.maximumf %7, %8 : vector<8x128xf32>
    %10 = arith.truncf %9 : vector<8x128xf32> to vector<8x128xbf16>
    %c0_8 = arith.constant 0 : index
    %c0_9 = arith.constant 0 : index
    %11 = vector.load %arg3[%c0_8, %c0_9] : memref<128x128xbf16, #tpu.memory_space<vmem>>, vector<128x128xbf16>
    %cst_10 = arith.constant dense<0.000000e+00> : vector<8x128xf32>
    %12 = tpu.matmul %10, %11, %cst_10 {dimension_numbers = #tpu.dot_dimension_numbers<[1], [0], [0], [1], [0, 0, 1, 1], [], []>} : vector<8x128xbf16>, vector<128x128xbf16>, vector<8x128xf32> -> vector<8x128xf32>
    %13 = vector.broadcast %1 : vector<1x128xf32> to vector<8x128xf32>
    %14 = arith.addf %12, %13 : vector<8x128xf32>
    %cst_11 = arith.constant 0.000000e+00 : f32
    %15 = vector.broadcast %cst_11 : f32 to vector<8x128xf32>
    %16 = arith.maximumf %14, %15 : vector<8x128xf32>
    %17 = arith.truncf %16 : vector<8x128xf32> to vector<8x128xbf16>
    %c0_12 = arith.constant 0 : index
    %c0_13 = arith.constant 0 : index
    %18 = vector.load %arg4[%c0_12, %c0_13] : memref<128x128xbf16, #tpu.memory_space<vmem>>, vector<128x128xbf16>
    %cst_14 = arith.constant dense<0.000000e+00> : vector<8x128xf32>
    %19 = tpu.matmul %17, %18, %cst_14 {dimension_numbers = #tpu.dot_dimension_numbers<[1], [0], [0], [1], [0, 0, 1, 1], [], []>} : vector<8x128xbf16>, vector<128x128xbf16>, vector<8x128xf32> -> vector<8x128xf32>
    %20 = vector.broadcast %2 : vector<1x128xf32> to vector<8x128xf32>
    %21 = arith.addf %19, %20 : vector<8x128xf32>
    %c0_15 = arith.constant 0 : index
    %c0_16 = arith.constant 0 : index
    %22 = vector.load %arg6[%c0_15, %c0_16] : memref<8x128xf32, #tpu.memory_space<vmem>>, vector<8x128xf32>
    tpu.vector_store %arg6[%c0_15, %c0_16], %21 {strides = array<i32>} : memref<8x128xf32, #tpu.memory_space<vmem>>, vector<8x128xf32>,
    return
  }
  func.func @transform_0(%arg0: i32) -> (i32, i32) {
    %c0_i32 = arith.constant 0 : i32
    %c0_i32_0 = arith.constant 0 : i32
    return %arg0, %c0_i32 : i32, i32
  }
  func.func @transform_1(%arg0: i32) -> (i32, i32) {
    %c0_i32 = arith.constant 0 : i32
    %c0_i32_0 = arith.constant 0 : i32
    %c0_i32_1 = arith.constant 0 : i32
    return %c0_i32, %c0_i32_0 : i32, i32
  }
  func.func @transform_2(%arg0: i32) -> (i32, i32) {
    %c0_i32 = arith.constant 0 : i32
    %c0_i32_0 = arith.constant 0 : i32
    %c0_i32_1 = arith.constant 0 : i32
    return %c0_i32, %c0_i32_0 : i32, i32
  }
  func.func @transform_3(%arg0: i32) -> (i32, i32) {
    %c0_i32 = arith.constant 0 : i32
    %c0_i32_0 = arith.constant 0 : i32
    %c0_i32_1 = arith.constant 0 : i32
    return %c0_i32, %c0_i32_0 : i32, i32
  }
  func.func @transform_4(%arg0: i32) -> (i32, i32) {
    %c0_i32 = arith.constant 0 : i32
    %c0_i32_0 = arith.constant 0 : i32
    %c0_i32_1 = arith.constant 0 : i32
    return %c0_i32, %c0_i32_0 : i32, i32
  }
  func.func @transform_5(%arg0: i32) -> (i32, i32) {
    %c0_i32 = arith.constant 0 : i32
    %c0_i32_0 = arith.constant 0 : i32
    return %arg0, %c0_i32 : i32, i32
  }
}

</mosaic_0001>

<llo_original>
// kernel: tpu_custom_call.1
$region0: #{tpu_custom_call.1}
  #allocation0 [shape = 'u32[]', space=smem, size = 0x4, offset = 0x4, fixed_abs, tag = 'smem constant byte address 0x4 - core index']
  #allocation1 [shape = 'u32[144,128]{1,0:T(1,128)}', space=vmem, size = 0x12000, scoped, tag = 'internal scratch']
  %s0 = inlined_call_operand.hbm [shape: bf16[8,128], index: 0, kind: input, shape index: {}]
  %s1 = inlined_call_operand.hbm [shape: bf16[128,128], index: 1, kind: input, shape index: {}]
  %s2 = inlined_call_operand.hbm [shape: bf16[128,128], index: 2, kind: input, shape index: {}]
  %s3 = inlined_call_operand.hbm [shape: bf16[128,128], index: 3, kind: input, shape index: {}]
  %s4 = inlined_call_operand.hbm [shape: f32[8,128], index: 4, kind: input, shape index: {}]
  %s5 = inlined_call_operand.hbm [shape: f32[8,128], index: 5, kind: output, shape index: {}]
  %s6 = sld [smem:[#allocation0]]
  $region50: #{tpu_custom_call.1} parent=0
    _
  %s8 = ssub.s32 1, %s6
  %s9 = scalar_select 0, %s8, %s6
  $region1: #{tpu_custom_call.1} parent=0
    #allocation2 [shape = 'u8[2048]{0}', space=vmem, size = 0x800, scoped, tag = 'input window, operand 0, single buffered']
    #allocation3 [shape = 's32[1]{0}', space=sflag, size = 0x4, scoped, tag = 'scoped memory for tpu_custom_call.1']
    #allocation4 [shape = 's32[1]{0}', space=sflag, size = 0x4, scoped, tag = 'scoped memory for tpu_custom_call.1']
    #allocation5 [shape = 'u8[32768]{0}', space=vmem, size = 0x8000, scoped, tag = 'input window, operand 1, single buffered']
    #allocation6 [shape = 's32[1]{0}', space=sflag, size = 0x4, scoped, tag = 'scoped memory for tpu_custom_call.1']
    #allocation7 [shape = 'u8[32768]{0}', space=vmem, size = 0x8000, scoped, tag = 'input window, operand 2, single buffered']
    #allocation8 [shape = 'u8[32768]{0}', space=vmem, size = 0x8000, scoped, tag = 'input window, operand 3, single buffered']
    #allocation9 [shape = 's32[1]{0}', space=sflag, size = 0x4, scoped, tag = 'scoped memory for tpu_custom_call.1']
    #allocation10 [shape = 'u8[4096]{0}', space=vmem, size = 0x1000, scoped, tag = 'input window, operand 4, single buffered']
    #allocation11 [shape = 'u8[4096]{0}', space=vmem, size = 0x1000, scoped, tag = 'output window, operand 0, single buffered']
    %10 = vsyncpa [#allocation3], 0
    %11 = vsyncpa [#allocation6], 0
    %12 = vsyncpa [#allocation9], 0
    %13 = vsyncpa [#allocation4], 0
    // Predicated region
    $region2: #{tpu_custom_call.1} parent=1 // pred_check
      _
    $region3: #{tpu_custom_call.1} parent=1 // pred_check_branch
      %15 = sbr.rel (0) target = $region5
    $region4: #{tpu_custom_call.1} parent=1 // pred_region
      %s17 = ssub.s32 64, 64
      %18 = vsyncadd [#allocation3], %s17
      %s20 = sshll.u32 [#allocation2], 4
      %s21 = int_to_ptr.vmem [resolvable:$true] %s20
      %23 = dma.hbm_to_vmem [thread:$0]  %s0, 64, %s21, [#allocation3]
    $region5: #{tpu_custom_call.1} parent=1 // pred_fallthru
      _
    // Predicated region
    $region6: #{tpu_custom_call.1} parent=1 // pred_check
      _
    $region7: #{tpu_custom_call.1} parent=1 // pred_check_branch
      %25 = sbr.rel (0) target = $region9
    $region8: #{tpu_custom_call.1} parent=1 // pred_region
      %s27 = ssub.s32 1024, 1024
      %28 = vsyncadd [#allocation6], %s27
      %s29 = sshll.u32 [#allocation5], 4
      %s30 = int_to_ptr.vmem [resolvable:$true] %s29
      %35 = dma.hbm_to_vmem [thread:$0]  %s1, 1024, %s30, [#allocation6], 64, 64, 4
    $region9: #{tpu_custom_call.1} parent=1 // pred_fallthru
      _
    // Predicated region
    $region10: #{tpu_custom_call.1} parent=1 // pred_check
      _
    $region11: #{tpu_custom_call.1} parent=1 // pred_check_branch
      %37 = sbr.rel (0) target = $region13
    $region12: #{tpu_custom_call.1} parent=1 // pred_region
      %s39 = ssub.s32 1024, 1024
      %40 = vsyncadd [#allocation6], %s39
      %s41 = sshll.u32 [#allocation7], 4
      %s42 = int_to_ptr.vmem [resolvable:$true] %s41
      %47 = dma.hbm_to_vmem [thread:$0]  %s2, 1024, %s42, [#allocation6], 64, 64, 4
    $region13: #{tpu_custom_call.1} parent=1 // pred_fallthru
      _
    // Predicated region
    $region14: #{tpu_custom_call.1} parent=1 // pred_check
      _
    $region15: #{tpu_custom_call.1} parent=1 // pred_check_branch
      %49 = sbr.rel (0) target = $region17
    $region16: #{tpu_custom_call.1} parent=1 // pred_region
      %s51 = ssub.s32 1024, 1024
      %52 = vsyncadd [#allocation9], %s51
      %s53 = sshll.u32 [#allocation8], 4
      %s54 = int_to_ptr.vmem [resolvable:$true] %s53
      %59 = dma.hbm_to_vmem [thread:$0]  %s3, 1024, %s54, [#allocation9], 64, 64, 4
    $region17: #{tpu_custom_call.1} parent=1 // pred_fallthru
      _
    // Predicated region
    $region18: #{tpu_custom_call.1} parent=1 // pred_check
      _
    $region19: #{tpu_custom_call.1} parent=1 // pred_check_branch
      %61 = sbr.rel (0) target = $region21
    $region20: #{tpu_custom_call.1} parent=1 // pred_region
      %s63 = ssub.s32 128, 128
      %64 = vsyncadd [#allocation9], %s63
      %s66 = sshll.u32 [#allocation10], 4
      %s67 = int_to_ptr.vmem [resolvable:$true] %s66
      %69 = dma.hbm_to_vmem [thread:$0]  %s4, 128, %s67, [#allocation9]
    $region21: #{tpu_custom_call.1} parent=1 // pred_fallthru
      _
    // Predicated region
    $region22: #{tpu_custom_call.1} parent=1 // pred_check
      _
    $region23: #{tpu_custom_call.1} parent=1 // pred_check_branch
      %71 = sbr.rel (0) target = $region25
    $region24: #{tpu_custom_call.1} parent=1 // pred_region
      %72 = dma.done [#allocation3], 64
    $region25: #{tpu_custom_call.1} parent=1 // pred_fallthru
      _
    // Predicated region
    $region26: #{tpu_custom_call.1} parent=1 // pred_check
      _
    $region27: #{tpu_custom_call.1} parent=1 // pred_check_branch
      %74 = sbr.rel (0) target = $region29
    $region28: #{tpu_custom_call.1} parent=1 // pred_region
      %75 = dma.done [#allocation6], 1024
    $region29: #{tpu_custom_call.1} parent=1 // pred_fallthru
      _
    // Predicated region
    $region30: #{tpu_custom_call.1} parent=1 // pred_check
      _
    $region31: #{tpu_custom_call.1} parent=1 // pred_check_branch
      %77 = sbr.rel (0) target = $region33
    $region32: #{tpu_custom_call.1} parent=1 // pred_region
      %78 = dma.done [#allocation6], 1024
    $region33: #{tpu_custom_call.1} parent=1 // pred_fallthru
      _
    // Predicated region
    $region34: #{tpu_custom_call.1} parent=1 // pred_check
      _
    $region35: #{tpu_custom_call.1} parent=1 // pred_check_branch
      %80 = sbr.rel (0) target = $region37
    $region36: #{tpu_custom_call.1} parent=1 // pred_region
      %81 = dma.done [#allocation9], 1024
    $region37: #{tpu_custom_call.1} parent=1 // pred_fallthru
      _
    // Predicated region
    $region38: #{tpu_custom_call.1} parent=1 // pred_check
      _
    $region39: #{tpu_custom_call.1} parent=1 // pred_check_branch
      %83 = sbr.rel (0) target = $region41
    $region40: #{tpu_custom_call.1} parent=1 // pred_region
      %84 = dma.done [#allocation9], 128
    $region41: #{tpu_custom_call.1} parent=1 // pred_fallthru
      _
    %v86 = vld [vmem:[#allocation10] sm:$0x1]
    %v87 = vld [vmem:[#allocation10 + $0x1] sm:$0x1]
    %v88 = vld [vmem:[#allocation10 + $0x2] sm:$0x1]
    %v89 = vld [vmem:[#allocation2] sm:$0xf]
    %v90 = vld [vmem:[#allocation5] sm:$0xf]
    %v91 = vld [vmem:[#allocation5 + $0x4] sm:$0xf]
    %v92 = vld [vmem:[#allocation5 + $0x8] sm:$0xf]
    %v93 = vld [vmem:[#allocation5 + $0xc] sm:$0xf]
    %v94 = vld [vmem:[#allocation5 + $0x10] sm:$0xf]
    %v95 = vld [vmem:[#allocation5 + $0x14] sm:$0xf]
    %v96 = vld [vmem:[#allocation5 + $0x18] sm:$0xf]
    %v97 = vld [vmem:[#allocation5 + $0x1c] sm:$0xf]
    %v98 = vld [vmem:[#allocation5 + $0x20] sm:$0xf]
    %v99 = vld [vmem:[#allocation5 + $0x24] sm:$0xf]
    %v100 = vld [vmem:[#allocation5 + $0x28] sm:$0xf]
    %v101 = vld [vmem:[#allocation5 + $0x2c] sm:$0xf]
    %v102 = vld [vmem:[#allocation5 + $0x30] sm:$0xf]
    %v103 = vld [vmem:[#allocation5 + $0x34] sm:$0xf]
    %v104 = vld [vmem:[#allocation5 + $0x38] sm:$0xf]
    %v105 = vld [vmem:[#allocation5 + $0x3c] sm:$0xf]
    %v106 = vlaneseq
    %v107 = vshrl.u32 %v106, 7
    %v108 = vsub.s32 0, %v107
    %v109 = vrot.slane %v86, %v108
    %v126 = vunpack.c.l.b16 %v90
    %v127 = vunpack.c.l.b16 %v91
    %v128 = vunpack.c.l.b16 %v92
    %v129 = vunpack.c.l.b16 %v93
    %v130 = vunpack.c.l.b16 %v94
    %v131 = vunpack.c.l.b16 %v95
    %v132 = vunpack.c.l.b16 %v96
    %v133 = vunpack.c.l.b16 %v97
    %v134 = vunpack.c.l.b16 %v98
    %v135 = vunpack.c.l.b16 %v99
    %v136 = vunpack.c.l.b16 %v100
    %v137 = vunpack.c.l.b16 %v101
    %v138 = vunpack.c.l.b16 %v102
    %v139 = vunpack.c.l.b16 %v103
    %v140 = vunpack.c.l.b16 %v104
    %v141 = vunpack.c.l.b16 %v105
    %v142 = vpack.c.b16 %v127, %v126
    %v143 = vpack.c.b16 %v129, %v128
    %v144 = vpack.c.b16 %v131, %v130
    %v145 = vpack.c.b16 %v133, %v132
    %v146 = vpack.c.b16 %v135, %v134
    %v147 = vpack.c.b16 %v137, %v136
    %v148 = vpack.c.b16 %v139, %v138
    %v149 = vpack.c.b16 %v141, %v140
    %158 = vmatprep.subr.bf16.mxu0 0
    %159 = vmatpush1.bf16.msra.mxu0 %v149
    %160 = vmatprep.subr.bf16.mxu0 0
    %161 = vmatpush1.bf16.msra.mxu0 %v148
    %162 = vmatprep.subr.bf16.mxu0 0
    %163 = vmatpush1.bf16.msra.mxu0 %v147
    %164 = vmatprep.subr.bf16.mxu0 0
    %165 = vmatpush1.bf16.msra.mxu0 %v146
    %166 = vmatprep.subr.bf16.mxu0 0
    %167 = vmatpush1.bf16.msra.mxu0 %v145
    %168 = vmatprep.subr.bf16.mxu0 0
    %169 = vmatpush1.bf16.msra.mxu0 %v144
    %170 = vmatprep.subr.bf16.mxu0 0
    %171 = vmatpush1.bf16.msra.mxu0 %v143
    %172 = vmatprep.subr.bf16.mxu0 0
    %173 = vmatpush1.bf16.msra.mxu0 %v142
    %174 = vmatprep.subr.bf16.mxu0 0
    %175 = vmatpush2.bf16.msra.mxu0 0
    %176 = vmatprep.subr.bf16.mxu0 0
    %177 = vmatpush2.bf16.msra.mxu0 0
    %178 = vmatprep.subr.bf16.mxu0 0
    %179 = vmatpush2.bf16.msra.mxu0 0
    %180 = vmatprep.subr.bf16.mxu0 0
    %181 = vmatpush2.bf16.msra.mxu0 0
    %182 = vmatprep.subr.bf16.mxu0 0
    %183 = vmatpush2.bf16.msra.mxu0 0
    %184 = vmatprep.subr.bf16.mxu0 0
    %185 = vmatpush2.bf16.msra.mxu0 0
    %186 = vmatprep.subr.bf16.mxu0 0
    %187 = vmatpush2.bf16.msra.mxu0 0
    %188 = vmatprep.subr.bf16.mxu0 0
    %189 = vmatpush2.bf16.msra.mxu0 0
    %190 = vmatprep.mubr.bf16.mxu0 0
    %191 = vmatmul.mubr.bf16.gmra.mxu0 %v89
    %v192 = vpop.f32.mrf.mxu0
    %v193 = vadd.f32 %v109, %v192
    %v194 = vpop.f32.mrf.mxu0
    %v195 = vpop.f32.mrf.mxu0
    %v196 = vpop.f32.mrf.mxu0
    %197 = vdwg.mxu0
    %v198 = vmax.f32 %v193, 0.0
    %v199 = vpack.c.bf16 %v198, %v198
    %v200 = vld [vmem:[#allocation7] sm:$0xf]
    %v201 = vld [vmem:[#allocation7 + $0x4] sm:$0xf]
    %v202 = vld [vmem:[#allocation7 + $0x8] sm:$0xf]
    %v203 = vld [vmem:[#allocation7 + $0xc] sm:$0xf]
    %v204 = vld [vmem:[#allocation7 + $0x10] sm:$0xf]
    %v205 = vld [vmem:[#allocation7 + $0x14] sm:$0xf]
    %v206 = vld [vmem:[#allocation7 + $0x18] sm:$0xf]
    %v207 = vld [vmem:[#allocation7 + $0x1c] sm:$0xf]
    %v208 = vld [vmem:[#allocation7 + $0x20] sm:$0xf]
    %v209 = vld [vmem:[#allocation7 + $0x24] sm:$0xf]
    %v210 = vld [vmem:[#allocation7 + $0x28] sm:$0xf]
    %v211 = vld [vmem:[#allocation7 + $0x2c] sm:$0xf]
    %v212 = vld [vmem:[#allocation7 + $0x30] sm:$0xf]
    %v213 = vld [vmem:[#allocation7 + $0x34] sm:$0xf]
    %v214 = vld [vmem:[#allocation7 + $0x38] sm:$0xf]
    %v215 = vld [vmem:[#allocation7 + $0x3c] sm:$0xf]
    %v216 = vlaneseq
    %v217 = vshrl.u32 %v216, 7
    %v218 = vsub.s32 0, %v217
    %v219 = vrot.slane %v87, %v218
    %v236 = vunpack.c.l.b16 %v200
    %v237 = vunpack.c.l.b16 %v201
    %v238 = vunpack.c.l.b16 %v202
    %v239 = vunpack.c.l.b16 %v203
    %v240 = vunpack.c.l.b16 %v204
    %v241 = vunpack.c.l.b16 %v205
    %v242 = vunpack.c.l.b16 %v206
    %v243 = vunpack.c.l.b16 %v207
    %v244 = vunpack.c.l.b16 %v208
    %v245 = vunpack.c.l.b16 %v209
    %v246 = vunpack.c.l.b16 %v210
    %v247 = vunpack.c.l.b16 %v211
    %v248 = vunpack.c.l.b16 %v212
    %v249 = vunpack.c.l.b16 %v213
    %v250 = vunpack.c.l.b16 %v214
    %v251 = vunpack.c.l.b16 %v215
    %v252 = vpack.c.b16 %v237, %v236
    %v253 = vpack.c.b16 %v239, %v238
    %v254 = vpack.c.b16 %v241, %v240
    %v255 = vpack.c.b16 %v243, %v242
    %v256 = vpack.c.b16 %v245, %v244
    %v257 = vpack.c.b16 %v247, %v246
    %v258 = vpack.c.b16 %v249, %v248
    %v259 = vpack.c.b16 %v251, %v250
    %268 = vmatprep.subr.bf16.mxu0 0
    %269 = vmatpush1.bf16.msra.mxu0 %v259
    %270 = vmatprep.subr.bf16.mxu0 0
    %271 = vmatpush1.bf16.msra.mxu0 %v258
    %272 = vmatprep.subr.bf16.mxu0 0
    %273 = vmatpush1.bf16.msra.mxu0 %v257
    %274 = vmatprep.subr.bf16.mxu0 0
    %275 = vmatpush1.bf16.msra.mxu0 %v256
    %276 = vmatprep.subr.bf16.mxu0 0
    %277 = vmatpush1.bf16.msra.mxu0 %v255
    %278 = vmatprep.subr.bf16.mxu0 0
    %279 = vmatpush1.bf16.msra.mxu0 %v254
    %280 = vmatprep.subr.bf16.mxu0 0
    %281 = vmatpush1.bf16.msra.mxu0 %v253
    %282 = vmatprep.subr.bf16.mxu0 0
    %283 = vmatpush1.bf16.msra.mxu0 %v252
    %284 = vmatprep.subr.bf16.mxu0 0
    %285 = vmatpush2.bf16.msra.mxu0 0
    %286 = vmatprep.subr.bf16.mxu0 0
    %287 = vmatpush2.bf16.msra.mxu0 0
    %288 = vmatprep.subr.bf16.mxu0 0
    %289 = vmatpush2.bf16.msra.mxu0 0
    %290 = vmatprep.subr.bf16.mxu0 0
    %291 = vmatpush2.bf16.msra.mxu0 0
    %292 = vmatprep.subr.bf16.mxu0 0
    %293 = vmatpush2.bf16.msra.mxu0 0
    %294 = vmatprep.subr.bf16.mxu0 0
    %295 = vmatpush2.bf16.msra.mxu0 0
    %296 = vmatprep.subr.bf16.mxu0 0
    %297 = vmatpush2.bf16.msra.mxu0 0
    %298 = vmatprep.subr.bf16.mxu0 0
    %299 = vmatpush2.bf16.msra.mxu0 0
    %300 = vmatprep.mubr.bf16.mxu0 0
    %301 = vmatmul.mubr.bf16.gmra.mxu0 %v199
    %v302 = vpop.f32.mrf.mxu0
    %v303 = vadd.f32 %v219, %v302
    %v304 = vpop.f32.mrf.mxu0
    %v305 = vpop.f32.mrf.mxu0
    %v306 = vpop.f32.mrf.mxu0
    %307 = vdwg.mxu0
    %v308 = vmax.f32 %v303, 0.0
    %v309 = vpack.c.bf16 %v308, %v308
    %v310 = vld [vmem:[#allocation8] sm:$0xf]
    %v311 = vld [vmem:[#allocation8 + $0x4] sm:$0xf]
    %v312 = vld [vmem:[#allocation8 + $0x8] sm:$0xf]
    %v313 = vld [vmem:[#allocation8 + $0xc] sm:$0xf]
    %v314 = vld [vmem:[#allocation8 + $0x10] sm:$0xf]
    %v315 = vld [vmem:[#allocation8 + $0x14] sm:$0xf]
    %v316 = vld [vmem:[#allocation8 + $0x18] sm:$0xf]
    %v317 = vld [vmem:[#allocation8 + $0x1c] sm:$0xf]
    %v318 = vld [vmem:[#allocation8 + $0x20] sm:$0xf]
    %v319 = vld [vmem:[#allocation8 + $0x24] sm:$0xf]
    %v320 = vld [vmem:[#allocation8 + $0x28] sm:$0xf]
    %v321 = vld [vmem:[#allocation8 + $0x2c] sm:$0xf]
    %v322 = vld [vmem:[#allocation8 + $0x30] sm:$0xf]
    %v323 = vld [vmem:[#allocation8 + $0x34] sm:$0xf]
    %v324 = vld [vmem:[#allocation8 + $0x38] sm:$0xf]
    %v325 = vld [vmem:[#allocation8 + $0x3c] sm:$0xf]
    %v326 = vlaneseq
    %v327 = vshrl.u32 %v326, 7
    %v328 = vsub.s32 0, %v327
    %v329 = vrot.slane %v88, %v328
    %v346 = vunpack.c.l.b16 %v310
    %v347 = vunpack.c.l.b16 %v311
    %v348 = vunpack.c.l.b16 %v312
    %v349 = vunpack.c.l.b16 %v313
    %v350 = vunpack.c.l.b16 %v314
    %v351 = vunpack.c.l.b16 %v315
    %v352 = vunpack.c.l.b16 %v316
    %v353 = vunpack.c.l.b16 %v317
    %v354 = vunpack.c.l.b16 %v318
    %v355 = vunpack.c.l.b16 %v319
    %v356 = vunpack.c.l.b16 %v320
    %v357 = vunpack.c.l.b16 %v321
    %v358 = vunpack.c.l.b16 %v322
    %v359 = vunpack.c.l.b16 %v323
    %v360 = vunpack.c.l.b16 %v324
    %v361 = vunpack.c.l.b16 %v325
    %v362 = vpack.c.b16 %v347, %v346
    %v363 = vpack.c.b16 %v349, %v348
    %v364 = vpack.c.b16 %v351, %v350
    %v365 = vpack.c.b16 %v353, %v352
    %v366 = vpack.c.b16 %v355, %v354
    %v367 = vpack.c.b16 %v357, %v356
    %v368 = vpack.c.b16 %v359, %v358
    %v369 = vpack.c.b16 %v361, %v360
    %378 = vmatprep.subr.bf16.mxu0 0
    %379 = vmatpush1.bf16.msra.mxu0 %v369
    %380 = vmatprep.subr.bf16.mxu0 0
    %381 = vmatpush1.bf16.msra.mxu0 %v368
    %382 = vmatprep.subr.bf16.mxu0 0
    %383 = vmatpush1.bf16.msra.mxu0 %v367
    %384 = vmatprep.subr.bf16.mxu0 0
    %385 = vmatpush1.bf16.msra.mxu0 %v366
    %386 = vmatprep.subr.bf16.mxu0 0
    %387 = vmatpush1.bf16.msra.mxu0 %v365
    %388 = vmatprep.subr.bf16.mxu0 0
    %389 = vmatpush1.bf16.msra.mxu0 %v364
    %390 = vmatprep.subr.bf16.mxu0 0
    %391 = vmatpush1.bf16.msra.mxu0 %v363
    %392 = vmatprep.subr.bf16.mxu0 0
    %393 = vmatpush1.bf16.msra.mxu0 %v362
    %394 = vmatprep.subr.bf16.mxu0 0
    %395 = vmatpush2.bf16.msra.mxu0 0
    %396 = vmatprep.subr.bf16.mxu0 0
    %397 = vmatpush2.bf16.msra.mxu0 0
    %398 = vmatprep.subr.bf16.mxu0 0
    %399 = vmatpush2.bf16.msra.mxu0 0
    %400 = vmatprep.subr.bf16.mxu0 0
    %401 = vmatpush2.bf16.msra.mxu0 0
    %402 = vmatprep.subr.bf16.mxu0 0
    %403 = vmatpush2.bf16.msra.mxu0 0
    %404 = vmatprep.subr.bf16.mxu0 0
    %405 = vmatpush2.bf16.msra.mxu0 0
    %406 = vmatprep.subr.bf16.mxu0 0
    %407 = vmatpush2.bf16.msra.mxu0 0
    %408 = vmatprep.subr.bf16.mxu0 0
    %409 = vmatpush2.bf16.msra.mxu0 0
    %410 = vmatprep.mubr.bf16.mxu0 0
    %411 = vmatmul.mubr.bf16.gmra.mxu0 %v309
    %v412 = vpop.f32.mrf.mxu0
    %v413 = vadd.f32 %v329, %v412
    %v414 = vpop.f32.mrf.mxu0
    %v415 = vpop.f32.mrf.mxu0
    %v416 = vpop.f32.mrf.mxu0
    %417 = vdwg.mxu0
    %418 = vst [vmem:[#allocation11] sm:$0xff] %v413
    // Predicated region
    $region42: #{tpu_custom_call.1} parent=1 // pred_check
      _
    $region43: #{tpu_custom_call.1} parent=1 // pred_check_branch
      %420 = sbr.rel (0) target = $region45
    $region44: #{tpu_custom_call.1} parent=1 // pred_region
      %s422 = ssub.s32 128, 128
      %423 = vsyncadd [#allocation4], %s422
      %s425 = sshll.u32 [#allocation11], 4
      %s426 = int_to_ptr.vmem [resolvable:$true] %s425
      %428 = dma.vmem_to_hbm [thread:$0]  %s426, 128, %s5, [#allocation4]
    $region45: #{tpu_custom_call.1} parent=1 // pred_fallthru
      _
    // Predicated region
    $region46: #{tpu_custom_call.1} parent=1 // pred_check
      _
    $region47: #{tpu_custom_call.1} parent=1 // pred_check_branch
      %430 = sbr.rel (0) target = $region49
    $region48: #{tpu_custom_call.1} parent=1 // pred_region
      %431 = dma.done [#allocation4], 128
    $region49: #{tpu_custom_call.1} parent=1 // pred_fallthru
      _
    %432 = vsyncpa [#allocation3], 1
    %433 = vsyncpa [#allocation6], 1
    %434 = vsyncpa [#allocation9], 1
    %435 = vsyncpa [#allocation4], 1

</llo_original>
